<compile_context>
chip_gen: v7x
topology: tpu7x:2x2x1
jax: 0.10.0
libtpu: 0.0.40
codegen_flags: <defaults>
</compile_context>

<pallas_src>
import jax
import jax.numpy as jnp
from jax.experimental import pallas as pl
from jax.experimental.pallas import tpu as pltpu


def _choose_nt(n, c_max, itemsize):
    """Lane-aligned point tile so the widest (C, Nt) block is ~<= 256 KiB."""
    if n <= 128:
        return n
    target = (256 * 1024) // max(c_max * itemsize, 1)
    nt = max(128, (target // 128) * 128)
    return min(n, nt)


def _make_fused_kernel(channel_info):
    """channel_info: ((Cq, tq), (Cs, ts), (Cx, tx)); t* = label needs in-kernel transpose."""

    def _one(pred_ref, label_ref, out_ref, c, needs_t):
        p = pred_ref[0].astype(jnp.float32)          # (C, Nt), lane-dense
        l = label_ref[0]
        if needs_t:
            l = jnp.transpose(l)                     # (Nt, C) -> (C, Nt): XLU (free slot)
        d = p - l.astype(jnp.float32)
        sq = d * d
        if c == 1:
            out = sq                                 # (1, Nt): skip the reduce entirely
        else:
            out = jnp.sum(sq, axis=0, keepdims=True) * (1.0 / c)
        out_ref[0] = out.astype(out_ref.dtype)

    def kernel(qp_ref, ql_ref, sp_ref, sl_ref, xp_ref, xl_ref,
               qo_ref, so_ref, xo_ref):
        (cq, tq), (cs, ts), (cx, tx) = channel_info
        _one(qp_ref, ql_ref, qo_ref, cq, tq)
        _one(sp_ref, sl_ref, so_ref, cs, ts)
        _one(xp_ref, xl_ref, xo_ref, cx, tx)

    return kernel


def pointnet2_loss(preds, labels, *, nt=None):
    """JAX/Pallas equivalent of PointNet2Loss.forward (fused, one kernel launch)."""
    q_pred = preds["q_pred"]          # (B, Cq, N)
    s_pred = preds["score_pred"]      # (B, Cs, N, 1)
    x_pred = preds["xyz_pred"]        # (B, Cx, N)
    q_label = labels["q_label"]       # (B, N, Cq)
    s_label = labels["score_label"]   # (B, N, Cs)
    x_label = labels["xyz_label"]     # (B, N, Cx)

    B, Cq, N = q_pred.shape
    Cs = s_pred.shape[1]
    Cx = x_pred.shape[1]

    # Trailing singleton of score_pred matches the label unsqueeze in the torch
    # code; dropping it is a free (layout-preserving) reshape.
    s_pred3 = jnp.reshape(s_pred, (B, Cs, N))

    itemsize = jnp.dtype(q_pred.dtype).itemsize
    if nt is None:
        nt = _choose_nt(N, max(Cq, Cs, Cx), itemsize)
    n_tiles = pl.cdiv(N, nt)

    inputs, in_specs, channel_info = [], [], []

    def _add(pred_cn, label_nc, c):
        pred_spec = pl.BlockSpec((1, c, nt), lambda b, n: (b, 0, n))
        if c == 1:
            # (B, N, 1) -> (B, 1, N): free reshape, lane-dense, no transpose needed.
            label = jnp.reshape(label_nc, (B, 1, N))
            label_spec = pl.BlockSpec((1, 1, nt), lambda b, n: (b, 0, n))
            needs_t = False
        else:
            # Native channel-last label: no XLA-side transpose copy in HBM.
            label = label_nc
            label_spec = pl.BlockSpec((1, nt, c), lambda b, n: (b, n, 0))
            needs_t = True
        inputs.extend([pred_cn, label])
        in_specs.extend([pred_spec, label_spec])
        channel_info.append((c, needs_t))

    _add(q_pred, q_label, Cq)
    _add(s_pred3, s_label, Cs)
    _add(x_pred, x_label, Cx)

    out_dtypes = (
        jnp.promote_types(q_pred.dtype, q_label.dtype),
        jnp.promote_types(s_pred.dtype, s_label.dtype),
        jnp.promote_types(x_pred.dtype, x_label.dtype),
    )
    out_shape = [jax.ShapeDtypeStruct((B, 1, N), dt) for dt in out_dtypes]
    out_specs = [pl.BlockSpec((1, 1, nt), lambda b, n: (b, 0, n))
                 for _ in range(3)]

    kernel = _make_fused_kernel(tuple(channel_info))

    q_loss, s_loss, x_loss = pl.pallas_call(
        kernel,
        out_shape=out_shape,
        grid_spec=pltpu.PrefetchScalarGridSpec(
            num_scalar_prefetch=0,
            grid=(B, n_tiles),
            in_specs=in_specs,
            out_specs=out_specs,
        ),
        compiler_params=pltpu.CompilerParams(
            dimension_semantics=("parallel", "parallel"),
        ),
    )(*inputs)

    return {
        "score_loss": s_loss[..., None],   # (B, 1, N, 1) — matches torch output
        "q_loss": q_loss,                  # (B, 1, N)
        "xyz_loss": x_loss,                # (B, 1, N)
    }


if __name__ == "__main__":
    B, N = 2, 256
    Cq, Cs, Cxyz = 4, 1, 3

    key = jax.random.PRNGKey(0)
    k = jax.random.split(key, 6)

    preds = {
        "q_pred": jax.random.normal(k[0], (B, Cq, N), jnp.float32),
        "score_pred": jax.random.normal(k[1], (B, Cs, N, 1), jnp.float32),
        "xyz_pred": jax.random.normal(k[2], (B, Cxyz, N), jnp.float32),
    }
    labels = {
        "q_label": jax.random.normal(k[3], (B, N, Cq), jnp.float32),
        "score_label": jax.random.normal(k[4], (B, N, Cs), jnp.float32),
        "xyz_label": jax.random.normal(k[5], (B, N, Cxyz), jnp.float32),
    }

    # nt=128 exercises the tiled N grid axis (grid = (B, 2)).
    out = pointnet2_loss(preds, labels, nt=128)
    jax.block_until_ready(out)

    # pure-JAX reference (mirrors the torch forward)
    def ref(preds, labels):
        ql = jnp.transpose(labels["q_label"], (0, 2, 1))
        qloss = jnp.mean((preds["q_pred"] - ql) ** 2, axis=1, keepdims=True)
        sl = jnp.transpose(labels["score_label"], (0, 2, 1))[..., None]
        sloss = jnp.mean((preds["score_pred"] - sl) ** 2, axis=1, keepdims=True)
        xl = jnp.transpose(labels["xyz_label"], (0, 2, 1))
        xloss = jnp.mean((preds["xyz_pred"] - xl) ** 2, axis=1, keepdims=True)
        return {"score_loss": sloss, "q_loss": qloss, "xyz_loss": xloss}

    r = ref(preds, labels)
    assert out["q_loss"].shape == (B, 1, N)
    assert out["score_loss"].shape == (B, 1, N, 1)
    assert out["xyz_loss"].shape == (B, 1, N)
    for name in ("q_loss", "score_loss", "xyz_loss"):
        assert jnp.allclose(out[name], r[name], atol=1e-5, rtol=1e-5), name

    print("KERNEL_OK")
</pallas_src>

<mosaic_0001>
module attributes {stable_mosaic.version = 11 : i64} {
  func.func @kernel(%arg0: i32, %arg1: i32, %arg2: memref<1x4x128xf32, #tpu.memory_space<vmem>>, %arg3: memref<1x128x4xf32, #tpu.memory_space<vmem>>, %arg4: memref<1x1x128xf32, #tpu.memory_space<vmem>>, %arg5: memref<1x1x128xf32, #tpu.memory_space<vmem>>, %arg6: memref<1x3x128xf32, #tpu.memory_space<vmem>>, %arg7: memref<1x128x3xf32, #tpu.memory_space<vmem>>, %arg8: memref<1x1x128xf32, #tpu.memory_space<vmem>>, %arg9: memref<1x1x128xf32, #tpu.memory_space<vmem>>, %arg10: memref<1x1x128xf32, #tpu.memory_space<vmem>>) attributes {dimension_semantics = [#tpu.dimension_semantics<parallel>, #tpu.dimension_semantics<parallel>], iteration_bounds = array<i64: 2, 2>, scalar_prefetch = 0 : i64, scratch_operands = 0 : i64, tpu.core_type = #tpu.core_type<tc>, window_params = [{transform_indices = @transform_0, window_bounds = array<i64: 1, 4, 128>}, {transform_indices = @transform_1, window_bounds = array<i64: 1, 128, 4>}, {transform_indices = @transform_2, window_bounds = array<i64: 1, 1, 128>}, {transform_indices = @transform_3, window_bounds = array<i64: 1, 1, 128>}, {transform_indices = @transform_4, window_bounds = array<i64: 1, 3, 128>}, {transform_indices = @transform_5, window_bounds = array<i64: 1, 128, 3>}, {transform_indices = @transform_6, window_bounds = array<i64: 1, 1, 128>}, {transform_indices = @transform_7, window_bounds = array<i64: 1, 1, 128>}, {transform_indices = @transform_8, window_bounds = array<i64: 1, 1, 128>}]} {
    %c0 = arith.constant 0 : index
    %c0_0 = arith.constant 0 : index
    %c0_1 = arith.constant 0 : index
    %0 = vector.load %arg2[%c0, %c0_0, %c0_1] : memref<1x4x128xf32, #tpu.memory_space<vmem>>, vector<1x4x128xf32>
    %1 = vector.shape_cast %0 : vector<1x4x128xf32> to vector<4x128xf32>
    %c0_2 = arith.constant 0 : index
    %c0_3 = arith.constant 0 : index
    %c0_4 = arith.constant 0 : index
    %2 = vector.load %arg3[%c0_2, %c0_3, %c0_4] : memref<1x128x4xf32, #tpu.memory_space<vmem>>, vector<1x128x4xf32>
    %3 = vector.shape_cast %2 : vector<1x128x4xf32> to vector<128x4xf32>
    %4 = tpu.transpose %3, [1, 0] : vector<128x4xf32> -> vector<4x128xf32>
    %5 = arith.subf %1, %4 : vector<4x128xf32>
    %6 = arith.mulf %5, %5 : vector<4x128xf32>
    %cst = arith.constant dense<0.000000e+00> : vector<128xf32>
    %7 = vector.multi_reduction <add>, %6, %cst [0] : vector<4x128xf32> to vector<128xf32>
    %8 = vector.shape_cast %7 : vector<128xf32> to vector<1x128xf32>
    %cst_5 = arith.constant 2.500000e-01 : f32
    %9 = vector.broadcast %cst_5 : f32 to vector<1x128xf32>
    %10 = arith.mulf %8, %9 : vector<1x128xf32>
    %c0_6 = arith.constant 0 : index
    %c0_7 = arith.constant 0 : index
    %c0_8 = arith.constant 0 : index
    %11 = vector.load %arg8[%c0_6, %c0_7, %c0_8] : memref<1x1x128xf32, #tpu.memory_space<vmem>>, vector<1x1x128xf32>
    %12 = vector.shape_cast %11 : vector<1x1x128xf32> to vector<1x128xf32>
    %13 = vector.shape_cast %10 : vector<1x128xf32> to vector<1x1x128xf32>
    tpu.vector_store %arg8[%c0_6, %c0_7, %c0_8], %13 {strides = array<i32>} : memref<1x1x128xf32, #tpu.memory_space<vmem>>, vector<1x1x128xf32>,
    %c0_9 = arith.constant 0 : index
    %c0_10 = arith.constant 0 : index
    %c0_11 = arith.constant 0 : index
    %14 = vector.load %arg4[%c0_9, %c0_10, %c0_11] : memref<1x1x128xf32, #tpu.memory_space<vmem>>, vector<1x1x128xf32>
    %15 = vector.shape_cast %14 : vector<1x1x128xf32> to vector<1x128xf32>
    %c0_12 = arith.constant 0 : index
    %c0_13 = arith.constant 0 : index
    %c0_14 = arith.constant 0 : index
    %16 = vector.load %arg5[%c0_12, %c0_13, %c0_14] : memref<1x1x128xf32, #tpu.memory_space<vmem>>, vector<1x1x128xf32>
    %17 = vector.shape_cast %16 : vector<1x1x128xf32> to vector<1x128xf32>
    %18 = arith.subf %15, %17 : vector<1x128xf32>
    %19 = arith.mulf %18, %18 : vector<1x128xf32>
    %c0_15 = arith.constant 0 : index
    %c0_16 = arith.constant 0 : index
    %c0_17 = arith.constant 0 : index
    %20 = vector.load %arg9[%c0_15, %c0_16, %c0_17] : memref<1x1x128xf32, #tpu.memory_space<vmem>>, vector<1x1x128xf32>
    %21 = vector.shape_cast %20 : vector<1x1x128xf32> to vector<1x128xf32>
    %22 = vector.shape_cast %19 : vector<1x128xf32> to vector<1x1x128xf32>
    tpu.vector_store %arg9[%c0_15, %c0_16, %c0_17], %22 {strides = array<i32>} : memref<1x1x128xf32, #tpu.memory_space<vmem>>, vector<1x1x128xf32>,
    %c0_18 = arith.constant 0 : index
    %c0_19 = arith.constant 0 : index
    %c0_20 = arith.constant 0 : index
    %23 = vector.load %arg6[%c0_18, %c0_19, %c0_20] : memref<1x3x128xf32, #tpu.memory_space<vmem>>, vector<1x3x128xf32>
    %24 = vector.shape_cast %23 : vector<1x3x128xf32> to vector<3x128xf32>
    %c0_21 = arith.constant 0 : index
    %c0_22 = arith.constant 0 : index
    %c0_23 = arith.constant 0 : index
    %25 = vector.load %arg7[%c0_21, %c0_22, %c0_23] : memref<1x128x3xf32, #tpu.memory_space<vmem>>, vector<1x128x3xf32>
    %26 = vector.shape_cast %25 : vector<1x128x3xf32> to vector<128x3xf32>
    %27 = tpu.transpose %26, [1, 0] : vector<128x3xf32> -> vector<3x128xf32>
    %28 = arith.subf %24, %27 : vector<3x128xf32>
    %29 = arith.mulf %28, %28 : vector<3x128xf32>
    %cst_24 = arith.constant dense<0.000000e+00> : vector<128xf32>
    %30 = vector.multi_reduction <add>, %29, %cst_24 [0] : vector<3x128xf32> to vector<128xf32>
    %31 = vector.shape_cast %30 : vector<128xf32> to vector<1x128xf32>
    %cst_25 = arith.constant 0.333333343 : f32
    %32 = vector.broadcast %cst_25 : f32 to vector<1x128xf32>
    %33 = arith.mulf %31, %32 : vector<1x128xf32>
    %c0_26 = arith.constant 0 : index
    %c0_27 = arith.constant 0 : index
    %c0_28 = arith.constant 0 : index
    %34 = vector.load %arg10[%c0_26, %c0_27, %c0_28] : memref<1x1x128xf32, #tpu.memory_space<vmem>>, vector<1x1x128xf32>
    %35 = vector.shape_cast %34 : vector<1x1x128xf32> to vector<1x128xf32>
    %36 = vector.shape_cast %33 : vector<1x128xf32> to vector<1x1x128xf32>
    tpu.vector_store %arg10[%c0_26, %c0_27, %c0_28], %36 {strides = array<i32>} : memref<1x1x128xf32, #tpu.memory_space<vmem>>, vector<1x1x128xf32>,
    return
  }
  func.func @transform_0(%arg0: i32, %arg1: i32) -> (i32, i32, i32) {
    %c0_i32 = arith.constant 0 : i32
    %c0_i32_0 = arith.constant 0 : i32
    return %arg0, %c0_i32, %arg1 : i32, i32, i32
  }
  func.func @transform_1(%arg0: i32, %arg1: i32) -> (i32, i32, i32) {
    %c0_i32 = arith.constant 0 : i32
    %c0_i32_0 = arith.constant 0 : i32
    return %arg0, %arg1, %c0_i32 : i32, i32, i32
  }
  func.func @transform_2(%arg0: i32, %arg1: i32) -> (i32, i32, i32) {
    %c0_i32 = arith.constant 0 : i32
    %c0_i32_0 = arith.constant 0 : i32
    return %arg0, %c0_i32, %arg1 : i32, i32, i32
  }
  func.func @transform_3(%arg0: i32, %arg1: i32) -> (i32, i32, i32) {
    %c0_i32 = arith.constant 0 : i32
    %c0_i32_0 = arith.constant 0 : i32
    return %arg0, %c0_i32, %arg1 : i32, i32, i32
  }
  func.func @transform_4(%arg0: i32, %arg1: i32) -> (i32, i32, i32) {
    %c0_i32 = arith.constant 0 : i32
    %c0_i32_0 = arith.constant 0 : i32
    return %arg0, %c0_i32, %arg1 : i32, i32, i32
  }
  func.func @transform_5(%arg0: i32, %arg1: i32) -> (i32, i32, i32) {
    %c0_i32 = arith.constant 0 : i32
    %c0_i32_0 = arith.constant 0 : i32
    return %arg0, %arg1, %c0_i32 : i32, i32, i32
  }
  func.func @transform_6(%arg0: i32, %arg1: i32) -> (i32, i32, i32) {
    %c0_i32 = arith.constant 0 : i32
    %c0_i32_0 = arith.constant 0 : i32
    return %arg0, %c0_i32, %arg1 : i32, i32, i32
  }
  func.func @transform_7(%arg0: i32, %arg1: i32) -> (i32, i32, i32) {
    %c0_i32 = arith.constant 0 : i32
    %c0_i32_0 = arith.constant 0 : i32
    return %arg0, %c0_i32, %arg1 : i32, i32, i32
  }
  func.func @transform_8(%arg0: i32, %arg1: i32) -> (i32, i32, i32) {
    %c0_i32 = arith.constant 0 : i32
    %c0_i32_0 = arith.constant 0 : i32
    return %arg0, %c0_i32, %arg1 : i32, i32, i32
  }
}

</mosaic_0001>

<llo_original>
// kernel: tpu_custom_call.1
$region0: #{tpu_custom_call.1}
  #allocation0 [shape = 'u32[]', space=smem, size = 0x4, offset = 0x4, fixed_abs, tag = 'smem constant byte address 0x4 - core index']
  #allocation1 [shape = 'u32[144,128]{1,0:T(1,128)}', space=vmem, size = 0x12000, scoped, tag = 'internal scratch']
  %s0 = inlined_call_operand.vmem [shape: f32[2,4,256], index: 0, kind: input, shape index: {}]
  %s1 = inlined_call_operand.vmem [shape: f32[2,256,4], index: 1, kind: input, shape index: {}]
  %s2 = inlined_call_operand.vmem [shape: f32[2,1,256], index: 2, kind: input, shape index: {}]
  %s3 = inlined_call_operand.vmem [shape: f32[2,1,256], index: 3, kind: input, shape index: {}]
  %s4 = inlined_call_operand.vmem [shape: f32[2,3,256], index: 4, kind: input, shape index: {}]
  %s5 = inlined_call_operand.vmem [shape: f32[2,256,3], index: 5, kind: input, shape index: {}]
  %s6 = inlined_call_operand.hbm [shape: f32[2,1,256], index: 6, kind: output, shape index: {0}]
  %s7 = inlined_call_operand.hbm [shape: f32[2,1,256], index: 7, kind: output, shape index: {1}]
  %s8 = inlined_call_operand.hbm [shape: f32[2,1,256], index: 8, kind: output, shape index: {2}]
  %9 = xla_tuple %s6, %s7, %s8
  %s10 = sld [smem:[#allocation0]]
  $region73: #{tpu_custom_call.1} parent=0
    _
  %s12 = ssub.s32 1, %s10
  %s13 = scalar_select 0, %s12, %s10
  $region1: #{tpu_custom_call.1} parent=0
    #allocation2 [shape = 'u8[1024]{0}', space=vmem, size = 0x400, scoped, tag = 'output window, operand 0']
    #allocation3 [shape = 's32[2]{0}', space=sflag, size = 0x8, scoped, tag = 'scoped memory for tpu_custom_call.1']
    #allocation4 [shape = 'u8[1024]{0}', space=vmem, size = 0x400, scoped, tag = 'output window, operand 1']
    #allocation5 [shape = 's32[2]{0}', space=sflag, size = 0x8, scoped, tag = 'scoped memory for tpu_custom_call.1']
    #allocation6 [shape = 'u8[1024]{0}', space=vmem, size = 0x400, scoped, tag = 'output window, operand 2']
    %14 = vsyncpa [#allocation3], 0
    %s15 = scalar_lea.sflag [#allocation3], 1
    %16 = vsyncpa %s15, 0
    %17 = vsyncpa [#allocation5], 0
    %s18 = scalar_lea.sflag [#allocation5], 1
    %19 = vsyncpa %s18, 0
    loop: start=0, step=1, limit=6
    $region2: #{tpu_custom_call.1} parent=1 // loop_pre_header
      _
    $region3: #{tpu_custom_call.1} parent=1 // loop_header
      %s21 = sphi 0, %s25
      %p22 = scmp.ge.s32.totalorder %s21, 6
      %s28 = sphi 0, %s40
      %s29 = sphi 0, %s36
      %s30 = sphi 0, %s28
      %s31 = sphi 0, %s29
      %s32 = sphi 0, %s30
      %s33 = sphi 0, %s31
      %s45 = sphi 0, %s47
      %s48 = sphi 0, %s45
      %s49 = sphi 0, %s48
      %s65 = sphi 0, %s49
      %s73 = sphi 0, %s75
      %s76 = sphi 0, %s73
      %s77 = sphi 0, %s76
      %s93 = sphi 0, %s77
      %s101 = sphi 0, %s103
      %s104 = sphi 0, %s101
      %s105 = sphi 0, %s104
      %s121 = sphi 0, %s105
      %s129 = sphi 0, %s131
      %s132 = sphi 0, %s129
      %s133 = sphi 0, %s132
      %s149 = sphi 0, %s133
      %s157 = sphi 0, %s159
      %s160 = sphi 0, %s157
      %s161 = sphi 0, %s160
      %s177 = sphi 0, %s161
      %s185 = sphi 0, %s187
      %s188 = sphi 0, %s185
      %s189 = sphi 0, %s188
      %s205 = sphi 0, %s189
      %s213 = sphi 0, %s215
      %s216 = sphi 0, %s213
      %s217 = sphi 0, %s216
      %s233 = sphi 0, %s217
      %s241 = sphi 0, %s243
      %s244 = sphi 0, %s241
      %s245 = sphi 0, %s244
      %s261 = sphi 0, %s245
      %s269 = sphi 0, %s271
      %s272 = sphi 0, %s269
      %s273 = sphi 0, %s272
      %s289 = sphi 0, %s273
    $region4: #{tpu_custom_call.1} parent=1 // loop_header_branch
      %24 = sbr.rel (%p22) target = $region8
    $region5: #{tpu_custom_call.1} parent=1 // loop_body
      %s26 = ssub.s32 %s21, 1
      %s27 = ssub.s32 %s21, 2
      %s34 = sadd.s32 1, %s29
      %p35 = scmp.ge.s32.totalorder %s34, 2
      %s36 = scalar_select %p35, 0, %s34
      %s37 = sadd.s32 1, %s28
      %s38 = scalar_select %p35, %s37, %s28
      %p39 = scmp.ge.s32.totalorder %s38, 2
      %s40 = scalar_select %p39, 0, %s38
      %s41 = ssub.s32 %s28, %s40
      %s42 = ssub.s32 %s29, %s36
      %s43 = sor.u32 %s41, %s42
      %p44 = scmp.eq.s32.totalorder %s43, 0
      %s46 = sadd.s32 %s45, 1
      %s47 = scalar_select %p44, %s45, %s46
      %p50 = pneg %p44
      %p51 = scmp.eq.s32.totalorder %s21, 3
      %p52 = por %p50, %p51
      %p53 = scmp.ne.s32.totalorder %s45, %s48
      %p54 = scmp.eq.s32.totalorder %s21, 0
      %p55 = por %p53, %p54
      %p56 = scmp.ne.s32.totalorder %s45, %s48
      %p57 = scmp.eq.s32.totalorder %s26, 3
      %p58 = por %p56, %p57
      %p59 = scmp.ne.s32.totalorder %s48, %s49
      %p60 = scmp.eq.s32.totalorder %s26, 0
      %p61 = por %p59, %p60
      %p62 = scmp.ne.s32.totalorder %s48, %s49
      %p63 = scmp.eq.s32.totalorder %s27, 3
      %p64 = por %p62, %p63
      %p66 = scmp.ne.s32.totalorder %s49, %s65
      %p67 = scmp.eq.s32.totalorder %s27, 0
      %p68 = por %p66, %p67
      %s69 = ssub.s32 %s28, %s40
      %s70 = ssub.s32 %s29, %s36
      %s71 = sor.u32 %s69, %s70
      %p72 = scmp.eq.s32.totalorder %s71, 0
      %s74 = sadd.s32 %s73, 1
      %s75 = scalar_select %p72, %s73, %s74
      %p78 = pneg %p72
      %p79 = scmp.eq.s32.totalorder %s21, 3
      %p80 = por %p78, %p79
      %p81 = scmp.ne.s32.totalorder %s73, %s76
      %p82 = scmp.eq.s32.totalorder %s21, 0
      %p83 = por %p81, %p82
      %p84 = scmp.ne.s32.totalorder %s73, %s76
      %p85 = scmp.eq.s32.totalorder %s26, 3
      %p86 = por %p84, %p85
      %p87 = scmp.ne.s32.totalorder %s76, %s77
      %p88 = scmp.eq.s32.totalorder %s26, 0
      %p89 = por %p87, %p88
      %p90 = scmp.ne.s32.totalorder %s76, %s77
      %p91 = scmp.eq.s32.totalorder %s27, 3
      %p92 = por %p90, %p91
      %p94 = scmp.ne.s32.totalorder %s77, %s93
      %p95 = scmp.eq.s32.totalorder %s27, 0
      %p96 = por %p94, %p95
      %s97 = ssub.s32 %s28, %s40
      %s98 = ssub.s32 %s29, %s36
      %s99 = sor.u32 %s97, %s98
      %p100 = scmp.eq.s32.totalorder %s99, 0
      %s102 = sadd.s32 %s101, 1
      %s103 = scalar_select %p100, %s101, %s102
      %p106 = pneg %p100
      %p107 = scmp.eq.s32.totalorder %s21, 3
      %p108 = por %p106, %p107
      %p109 = scmp.ne.s32.totalorder %s101, %s104
      %p110 = scmp.eq.s32.totalorder %s21, 0
      %p111 = por %p109, %p110
      %p112 = scmp.ne.s32.totalorder %s101, %s104
      %p113 = scmp.eq.s32.totalorder %s26, 3
      %p114 = por %p112, %p113
      %p115 = scmp.ne.s32.totalorder %s104, %s105
      %p116 = scmp.eq.s32.totalorder %s26, 0
      %p117 = por %p115, %p116
      %p118 = scmp.ne.s32.totalorder %s104, %s105
      %p119 = scmp.eq.s32.totalorder %s27, 3
      %p120 = por %p118, %p119
      %p122 = scmp.ne.s32.totalorder %s105, %s121
      %p123 = scmp.eq.s32.totalorder %s27, 0
      %p124 = por %p122, %p123
      %s125 = ssub.s32 %s28, %s40
      %s126 = ssub.s32 %s29, %s36
      %s127 = sor.u32 %s125, %s126
      %p128 = scmp.eq.s32.totalorder %s127, 0
      %s130 = sadd.s32 %s129, 1
      %s131 = scalar_select %p128, %s129, %s130
      %p134 = pneg %p128
      %p135 = scmp.eq.s32.totalorder %s21, 3
      %p136 = por %p134, %p135
      %p137 = scmp.ne.s32.totalorder %s129, %s132
      %p138 = scmp.eq.s32.totalorder %s21, 0
      %p139 = por %p137, %p138
      %p140 = scmp.ne.s32.totalorder %s129, %s132
      %p141 = scmp.eq.s32.totalorder %s26, 3
      %p142 = por %p140, %p141
      %p143 = scmp.ne.s32.totalorder %s132, %s133
      %p144 = scmp.eq.s32.totalorder %s26, 0
      %p145 = por %p143, %p144
      %p146 = scmp.ne.s32.totalorder %s132, %s133
      %p147 = scmp.eq.s32.totalorder %s27, 3
      %p148 = por %p146, %p147
      %p150 = scmp.ne.s32.totalorder %s133, %s149
      %p151 = scmp.eq.s32.totalorder %s27, 0
      %p152 = por %p150, %p151
      %s153 = ssub.s32 %s28, %s40
      %s154 = ssub.s32 %s29, %s36
      %s155 = sor.u32 %s153, %s154
      %p156 = scmp.eq.s32.totalorder %s155, 0
      %s158 = sadd.s32 %s157, 1
      %s159 = scalar_select %p156, %s157, %s158
      %p162 = pneg %p156
      %p163 = scmp.eq.s32.totalorder %s21, 3
      %p164 = por %p162, %p163
      %p165 = scmp.ne.s32.totalorder %s157, %s160
      %p166 = scmp.eq.s32.totalorder %s21, 0
      %p167 = por %p165, %p166
      %p168 = scmp.ne.s32.totalorder %s157, %s160
      %p169 = scmp.eq.s32.totalorder %s26, 3
      %p170 = por %p168, %p169
      %p171 = scmp.ne.s32.totalorder %s160, %s161
      %p172 = scmp.eq.s32.totalorder %s26, 0
      %p173 = por %p171, %p172
      %p174 = scmp.ne.s32.totalorder %s160, %s161
      %p175 = scmp.eq.s32.totalorder %s27, 3
      %p176 = por %p174, %p175
      %p178 = scmp.ne.s32.totalorder %s161, %s177
      %p179 = scmp.eq.s32.totalorder %s27, 0
      %p180 = por %p178, %p179
      %s181 = ssub.s32 %s28, %s40
      %s182 = ssub.s32 %s29, %s36
      %s183 = sor.u32 %s181, %s182
      %p184 = scmp.eq.s32.totalorder %s183, 0
      %s186 = sadd.s32 %s185, 1
      %s187 = scalar_select %p184, %s185, %s186
      %p190 = pneg %p184
      %p191 = scmp.eq.s32.totalorder %s21, 3
      %p192 = por %p190, %p191
      %p193 = scmp.ne.s32.totalorder %s185, %s188
      %p194 = scmp.eq.s32.totalorder %s21, 0
      %p195 = por %p193, %p194
      %p196 = scmp.ne.s32.totalorder %s185, %s188
      %p197 = scmp.eq.s32.totalorder %s26, 3
      %p198 = por %p196, %p197
      %p199 = scmp.ne.s32.totalorder %s188, %s189
      %p200 = scmp.eq.s32.totalorder %s26, 0
      %p201 = por %p199, %p200
      %p202 = scmp.ne.s32.totalorder %s188, %s189
      %p203 = scmp.eq.s32.totalorder %s27, 3
      %p204 = por %p202, %p203
      %p206 = scmp.ne.s32.totalorder %s189, %s205
      %p207 = scmp.eq.s32.totalorder %s27, 0
      %p208 = por %p206, %p207
      %s209 = ssub.s32 %s28, %s40
      %s210 = ssub.s32 %s29, %s36
      %s211 = sor.u32 %s209, %s210
      %p212 = scmp.eq.s32.totalorder %s211, 0
      %s214 = sadd.s32 %s213, 1
      %s215 = scalar_select %p212, %s213, %s214
      %p218 = pneg %p212
      %p219 = scmp.eq.s32.totalorder %s21, 3
      %p220 = por %p218, %p219
      %p221 = scmp.ne.s32.totalorder %s213, %s216
      %p222 = scmp.eq.s32.totalorder %s21, 0
      %p223 = por %p221, %p222
      %p224 = scmp.ne.s32.totalorder %s213, %s216
      %p225 = scmp.eq.s32.totalorder %s26, 3
      %p226 = por %p224, %p225
      %p227 = scmp.ne.s32.totalorder %s216, %s217
      %p228 = scmp.eq.s32.totalorder %s26, 0
      %p229 = por %p227, %p228
      %p230 = scmp.ne.s32.totalorder %s216, %s217
      %p231 = scmp.eq.s32.totalorder %s27, 3
      %p232 = por %p230, %p231
      %p234 = scmp.ne.s32.totalorder %s217, %s233
      %p235 = scmp.eq.s32.totalorder %s27, 0
      %p236 = por %p234, %p235
      %s237 = ssub.s32 %s28, %s40
      %s238 = ssub.s32 %s29, %s36
      %s239 = sor.u32 %s237, %s238
      %p240 = scmp.eq.s32.totalorder %s239, 0
      %s242 = sadd.s32 %s241, 1
      %s243 = scalar_select %p240, %s241, %s242
      %p246 = pneg %p240
      %p247 = scmp.eq.s32.totalorder %s21, 3
      %p248 = por %p246, %p247
      %p249 = scmp.ne.s32.totalorder %s241, %s244
      %p250 = scmp.eq.s32.totalorder %s21, 0
      %p251 = por %p249, %p250
      %p252 = scmp.ne.s32.totalorder %s241, %s244
      %p253 = scmp.eq.s32.totalorder %s26, 3
      %p254 = por %p252, %p253
      %p255 = scmp.ne.s32.totalorder %s244, %s245
      %p256 = scmp.eq.s32.totalorder %s26, 0
      %p257 = por %p255, %p256
      %p258 = scmp.ne.s32.totalorder %s244, %s245
      %p259 = scmp.eq.s32.totalorder %s27, 3
      %p260 = por %p258, %p259
      %p262 = scmp.ne.s32.totalorder %s245, %s261
      %p263 = scmp.eq.s32.totalorder %s27, 0
      %p264 = por %p262, %p263
      %s265 = ssub.s32 %s28, %s40
      %s266 = ssub.s32 %s29, %s36
      %s267 = sor.u32 %s265, %s266
      %p268 = scmp.eq.s32.totalorder %s267, 0
      %s270 = sadd.s32 %s269, 1
      %s271 = scalar_select %p268, %s269, %s270
      %p274 = pneg %p268
      %p275 = scmp.eq.s32.totalorder %s21, 3
      %p276 = por %p274, %p275
      %p277 = scmp.ne.s32.totalorder %s269, %s272
      %p278 = scmp.eq.s32.totalorder %s21, 0
      %p279 = por %p277, %p278
      %p280 = scmp.ne.s32.totalorder %s269, %s272
      %p281 = scmp.eq.s32.totalorder %s26, 3
      %p282 = por %p280, %p281
      %p283 = scmp.ne.s32.totalorder %s272, %s273
      %p284 = scmp.eq.s32.totalorder %s26, 0
      %p285 = por %p283, %p284
      %p286 = scmp.ne.s32.totalorder %s272, %s273
      %p287 = scmp.eq.s32.totalorder %s27, 3
      %p288 = por %p286, %p287
      %p290 = scmp.ne.s32.totalorder %s273, %s289
      %p291 = scmp.eq.s32.totalorder %s27, 0
      %p292 = por %p290, %p291
      %p293 = scmp.le.s32.totalorder 1, %s21
      %p294 = scmp.lt.s32.totalorder %s21, 5
      %p295 = pnand %p293, %p294
      %p296 = pneg %p295
      // Predicated region
      $region9: #{tpu_custom_call.1} parent=5 // pred_check
        _
      $region10: #{tpu_custom_call.1} parent=5 // pred_check_branch
        %298 = sbr.rel (%p295) target = $region12
      $region11: #{tpu_custom_call.1} parent=5 // pred_region
        %s299 = ssub.s32 %s21, 1
      $region12: #{tpu_custom_call.1} parent=5 // pred_fallthru
        _
      %p300 = scmp.lt.s32.totalorder %s21, 4
      // Predicated region
      $region13: #{tpu_custom_call.1} parent=5 // pred_check
        %p301 = pneg %p300
      $region14: #{tpu_custom_call.1} parent=5 // pred_check_branch
        %303 = sbr.rel (%p301) target = $region16
      $region15: #{tpu_custom_call.1} parent=5 // pred_region
        // Predicated region
        $region17: #{tpu_custom_call.1} parent=15 // pred_check
          %p304 = pneg %p55
        $region18: #{tpu_custom_call.1} parent=15 // pred_check_branch
          %306 = sbr.rel (%p304) target = $region20
        $region19: #{tpu_custom_call.1} parent=15 // pred_region
          %p307 = scmp.lt.s32.totalorder %s28, 1
          %s308 = scalar_select %p307, %s28, 1
          %p309 = scmp.lt.s32.totalorder %s29, 1
          %s310 = scalar_select %p309, %s29, 1
          %s311 = smul.addr %s308, 2
          %s312 = sadd.s32 %s310, %s311
          %s313 = smul.addr %s312, 4
          %s314 = scalar_lea.vmem %s0, %s313
        $region20: #{tpu_custom_call.1} parent=15 // pred_fallthru
          _
        // Predicated region
        $region21: #{tpu_custom_call.1} parent=15 // pred_check
          %p315 = pneg %p83
        $region22: #{tpu_custom_call.1} parent=15 // pred_check_branch
          %317 = sbr.rel (%p315) target = $region24
        $region23: #{tpu_custom_call.1} parent=15 // pred_region
          %s318 = smul.u32 16, %s29
          %p319 = scmp.lt.s32.totalorder %s28, 1
          %s320 = scalar_select %p319, %s28, 1
          %p321 = scmp.lt.s32.totalorder %s318, 31
          %s322 = scalar_select %p321, %s318, 31
          %s323 = smul.addr %s320, 32
          %s324 = sadd.s32 %s322, %s323
          %s325 = smul.addr %s324, 8
          %s326 = scalar_lea.vmem %s1, %s325
          %s327 = smul.u32 16, %s29
        $region24: #{tpu_custom_call.1} parent=15 // pred_fallthru
          _
        // Predicated region
        $region25: #{tpu_custom_call.1} parent=15 // pred_check
          %p328 = pneg %p111
        $region26: #{tpu_custom_call.1} parent=15 // pred_check_branch
          %330 = sbr.rel (%p328) target = $region28
        $region27: #{tpu_custom_call.1} parent=15 // pred_region
          %p331 = scmp.lt.s32.totalorder %s28, 1
          %s332 = scalar_select %p331, %s28, 1
          %p333 = scmp.lt.s32.totalorder %s29, 1
          %s334 = scalar_select %p333, %s29, 1
          %s335 = smul.addr %s332, 2
          %s336 = sadd.s32 %s334, %s335
          %s337 = scalar_lea.vmem %s2, %s336
        $region28: #{tpu_custom_call.1} parent=15 // pred_fallthru
          _
        // Predicated region
        $region29: #{tpu_custom_call.1} parent=15 // pred_check
          %p338 = pneg %p139
        $region30: #{tpu_custom_call.1} parent=15 // pred_check_branch
          %340 = sbr.rel (%p338) target = $region32
        $region31: #{tpu_custom_call.1} parent=15 // pred_region
          %p341 = scmp.lt.s32.totalorder %s28, 1
          %s342 = scalar_select %p341, %s28, 1
          %p343 = scmp.lt.s32.totalorder %s29, 1
          %s344 = scalar_select %p343, %s29, 1
          %s345 = smul.addr %s342, 2
          %s346 = sadd.s32 %s344, %s345
          %s347 = scalar_lea.vmem %s3, %s346
        $region32: #{tpu_custom_call.1} parent=15 // pred_fallthru
          _
        // Predicated region
        $region33: #{tpu_custom_call.1} parent=15 // pred_check
          %p348 = pneg %p167
        $region34: #{tpu_custom_call.1} parent=15 // pred_check_branch
          %350 = sbr.rel (%p348) target = $region36
        $region35: #{tpu_custom_call.1} parent=15 // pred_region
          %p351 = scmp.lt.s32.totalorder %s28, 1
          %s352 = scalar_select %p351, %s28, 1
          %p353 = scmp.lt.s32.totalorder %s29, 1
          %s354 = scalar_select %p353, %s29, 1
          %s355 = smul.addr %s352, 2
          %s356 = sadd.s32 %s354, %s355
          %s357 = smul.addr %s356, 4
          %s358 = scalar_lea.vmem %s4, %s357
        $region36: #{tpu_custom_call.1} parent=15 // pred_fallthru
          _
        // Predicated region
        $region37: #{tpu_custom_call.1} parent=15 // pred_check
          %p359 = pneg %p195
        $region38: #{tpu_custom_call.1} parent=15 // pred_check_branch
          %361 = sbr.rel (%p359) target = $region40
        $region39: #{tpu_custom_call.1} parent=15 // pred_region
          %s362 = smul.u32 16, %s29
          %p363 = scmp.lt.s32.totalorder %s28, 1
          %s364 = scalar_select %p363, %s28, 1
          %p365 = scmp.lt.s32.totalorder %s362, 31
          %s366 = scalar_select %p365, %s362, 31
          %s367 = smul.addr %s364, 32
          %s368 = sadd.s32 %s366, %s367
          %s369 = smul.addr %s368, 8
          %s370 = scalar_lea.vmem %s5, %s369
          %s371 = smul.u32 16, %s29
        $region40: #{tpu_custom_call.1} parent=15 // pred_fallthru
          _
      $region16: #{tpu_custom_call.1} parent=5 // pred_fallthru
        _
      %p372 = scmp.le.s32.totalorder 1, %s21
      %p373 = scmp.lt.s32.totalorder %s21, 5
      %p374 = pnand %p372, %p373
      %p375 = pneg %p374
      // Predicated region
      $region41: #{tpu_custom_call.1} parent=5 // pred_check
        _
      $region42: #{tpu_custom_call.1} parent=5 // pred_check_branch
        %377 = sbr.rel (%p374) target = $region44
      $region43: #{tpu_custom_call.1} parent=5 // pred_region
        %s378 = ssub.s32 %s21, 1
        %p379 = scmp.lt.s32.totalorder %s30, 1
        %s380 = scalar_select %p379, %s30, 1
        %p381 = scmp.lt.s32.totalorder %s31, 1
        %s382 = scalar_select %p381, %s31, 1
        %s383 = smul.addr %s380, 2
        %s384 = sadd.s32 %s382, %s383
        %s385 = smul.addr %s384, 4
        %s386 = scalar_lea.vmem %s0, %s385
        %p387 = pneg %p61
        %p388 = pneg %p58
        %s389 = smul.u32 16, %s31
        %p390 = scmp.lt.s32.totalorder %s30, 1
        %s391 = scalar_select %p390, %s30, 1
        %p392 = scmp.lt.s32.totalorder %s389, 31
        %s393 = scalar_select %p392, %s389, 31
        %s394 = smul.addr %s391, 32
        %s395 = sadd.s32 %s393, %s394
        %s396 = smul.addr %s395, 8
        %s397 = scalar_lea.vmem %s1, %s396
        %p398 = pneg %p89
        %p399 = pneg %p86
        %p400 = scmp.lt.s32.totalorder %s30, 1
        %s401 = scalar_select %p400, %s30, 1
        %p402 = scmp.lt.s32.totalorder %s31, 1
        %s403 = scalar_select %p402, %s31, 1
        %s404 = smul.addr %s401, 2
        %s405 = sadd.s32 %s403, %s404
        %s406 = scalar_lea.vmem %s2, %s405
        %p407 = pneg %p117
        %p408 = pneg %p114
        %p409 = scmp.lt.s32.totalorder %s30, 1
        %s410 = scalar_select %p409, %s30, 1
        %p411 = scmp.lt.s32.totalorder %s31, 1
        %s412 = scalar_select %p411, %s31, 1
        %s413 = smul.addr %s410, 2
        %s414 = sadd.s32 %s412, %s413
        %s415 = scalar_lea.vmem %s3, %s414
        %p416 = pneg %p145
        %p417 = pneg %p142
        %p418 = scmp.lt.s32.totalorder %s30, 1
        %s419 = scalar_select %p418, %s30, 1
        %p420 = scmp.lt.s32.totalorder %s31, 1
        %s421 = scalar_select %p420, %s31, 1
        %s422 = smul.addr %s419, 2
        %s423 = sadd.s32 %s421, %s422
        %s424 = smul.addr %s423, 4
        %s425 = scalar_lea.vmem %s4, %s424
        %p426 = pneg %p173
        %p427 = pneg %p170
        %s428 = smul.u32 16, %s31
        %p429 = scmp.lt.s32.totalorder %s30, 1
        %s430 = scalar_select %p429, %s30, 1
        %p431 = scmp.lt.s32.totalorder %s428, 31
        %s432 = scalar_select %p431, %s428, 31
        %s433 = smul.addr %s430, 32
        %s434 = sadd.s32 %s432, %s433
        %s435 = smul.addr %s434, 8
        %s436 = scalar_lea.vmem %s5, %s435
        %p437 = pneg %p201
        %p438 = pneg %p198
        %p439 = pneg %p229
        %p440 = pneg %p226
        %s441 = sand.u32 %s216, 1
        %s442 = scalar_lea.sflag [#allocation3], %s441
        %s443 = sand.u32 %s216, 1
        %s444 = scalar_lea.vmem [#allocation2], %s443
        %p445 = pneg %p257
        %p446 = pneg %p254
        %s447 = sand.u32 %s26, 1
        %s448 = scalar_lea.sflag [#allocation5], %s447
        %s449 = sand.u32 %s244, 1
        %s450 = scalar_lea.vmem [#allocation4], %s449
        %p451 = pneg %p285
        %p452 = pneg %p282
        %s453 = sand.u32 %s26, 1
        %s454 = scalar_lea.sflag [#allocation5], %s453
        %s455 = sand.u32 %s272, 1
        %s456 = scalar_lea.vmem [#allocation6], %s455
        %p457 = scmp.lt.s32.totalorder %s30, 1
        %s458 = scalar_select %p457, %s30, 1
        %p459 = scmp.lt.s32.totalorder %s31, 1
        %s460 = scalar_select %p459, %s31, 1
        %s461 = smul.addr %s458, 2
        %s462 = sadd.s32 %s460, %s461
        %s463 = smul.addr %s462, 4
        %s464 = scalar_lea.vmem %s0, %s463
        %s465 = smul.u32 16, %s31
        %p466 = scmp.lt.s32.totalorder %s30, 1
        %s467 = scalar_select %p466, %s30, 1
        %p468 = scmp.lt.s32.totalorder %s465, 31
        %s469 = scalar_select %p468, %s465, 31
        %s470 = smul.addr %s467, 32
        %s471 = sadd.s32 %s469, %s470
        %s472 = smul.addr %s471, 8
        %s473 = scalar_lea.vmem %s1, %s472
        %s474 = smul.u32 16, %s31
        %p475 = scmp.lt.s32.totalorder %s30, 1
        %s476 = scalar_select %p475, %s30, 1
        %p477 = scmp.lt.s32.totalorder %s31, 1
        %s478 = scalar_select %p477, %s31, 1
        %s479 = smul.addr %s476, 2
        %s480 = sadd.s32 %s478, %s479
        %s481 = scalar_lea.vmem %s2, %s480
        %p482 = scmp.lt.s32.totalorder %s30, 1
        %s483 = scalar_select %p482, %s30, 1
        %p484 = scmp.lt.s32.totalorder %s31, 1
        %s485 = scalar_select %p484, %s31, 1
        %s486 = smul.addr %s483, 2
        %s487 = sadd.s32 %s485, %s486
        %s488 = scalar_lea.vmem %s3, %s487
        %p489 = scmp.lt.s32.totalorder %s30, 1
        %s490 = scalar_select %p489, %s30, 1
        %p491 = scmp.lt.s32.totalorder %s31, 1
        %s492 = scalar_select %p491, %s31, 1
        %s493 = smul.addr %s490, 2
        %s494 = sadd.s32 %s492, %s493
        %s495 = smul.addr %s494, 4
        %s496 = scalar_lea.vmem %s4, %s495
        %s497 = smul.u32 16, %s31
        %p498 = scmp.lt.s32.totalorder %s30, 1
        %s499 = scalar_select %p498, %s30, 1
        %p500 = scmp.lt.s32.totalorder %s497, 31
        %s501 = scalar_select %p500, %s497, 31
        %s502 = smul.addr %s499, 32
        %s503 = sadd.s32 %s501, %s502
        %s504 = smul.addr %s503, 8
        %s505 = scalar_lea.vmem %s5, %s504
        %s506 = smul.u32 16, %s31
        %v507 = vld [vmem:[%s464] sm:$0xf]
        %v508 = vld [vmem:[%s473] sm:$0xff]
        %v509 = vld [vmem:[%s473 + $0x8] sm:$0xff]
        %v510 = vld [vmem:[%s473 + $0x10] sm:$0xff]
        %v511 = vld [vmem:[%s473 + $0x18] sm:$0xff]
        %v512 = vld [vmem:[%s473 + $0x20] sm:$0xff]
        %v513 = vld [vmem:[%s473 + $0x28] sm:$0xff]
        %v514 = vld [vmem:[%s473 + $0x30] sm:$0xff]
        %v515 = vld [vmem:[%s473 + $0x38] sm:$0xff]
        %v516 = vld [vmem:[%s473 + $0x40] sm:$0xff]
        %v517 = vld [vmem:[%s473 + $0x48] sm:$0xff]
        %v518 = vld [vmem:[%s473 + $0x50] sm:$0xff]
        %v519 = vld [vmem:[%s473 + $0x58] sm:$0xff]
        %v520 = vld [vmem:[%s473 + $0x60] sm:$0xff]
        %v521 = vld [vmem:[%s473 + $0x68] sm:$0xff]
        %v522 = vld [vmem:[%s473 + $0x70] sm:$0xff]
        %v523 = vld [vmem:[%s473 + $0x78] sm:$0xff]
        %524 = vxpose.xlu0.b32.start [1/16] %v508, 128
        %525 = vxpose.xlu0.b32.cont [2/16] %v509, 128
        %526 = vxpose.xlu0.b32.cont [3/16] %v510, 128
        %527 = vxpose.xlu0.b32.cont [4/16] %v511, 128
        %528 = vxpose.xlu0.b32.cont [5/16] %v512, 128
        %529 = vxpose.xlu0.b32.cont [6/16] %v513, 128
        %530 = vxpose.xlu0.b32.cont [7/16] %v514, 128
        %531 = vxpose.xlu0.b32.cont [8/16] %v515, 128
        %532 = vxpose.xlu0.b32.cont [9/16] %v516, 128
        %533 = vxpose.xlu0.b32.cont [10/16] %v517, 128
        %534 = vxpose.xlu0.b32.cont [11/16] %v518, 128
        %535 = vxpose.xlu0.b32.cont [12/16] %v519, 128
        %536 = vxpose.xlu0.b32.cont [13/16] %v520, 128
        %537 = vxpose.xlu0.b32.cont [14/16] %v521, 128
        %538 = vxpose.xlu0.b32.cont [15/16] %v522, 128
        %539 = vxpose.xlu0.b32.end [16/16] %v523, 128
        %v540 = vpop.trf.xlu0
        %v541 = vpop.trf.xlu0
        %v542 = vpop.trf.xlu0
        %v543 = vpop.trf.xlu0
        %v544 = vpop.trf.xlu0
        %v545 = vpop.trf.xlu0
        %v546 = vpop.trf.xlu0
        %v547 = vpop.trf.xlu0
        %v548 = vpop.trf.xlu0
        %v549 = vpop.trf.xlu0
        %v550 = vpop.trf.xlu0
        %v551 = vpop.trf.xlu0
        %v552 = vpop.trf.xlu0
        %v553 = vpop.trf.xlu0
        %v554 = vpop.trf.xlu0
        %v555 = vpop.trf.xlu0
        %v556 = vsub.f32 %v507, %v540
        %v557 = vmul.f32 %v556, %v556
        %vm558 = vcmask 1043456
        %v559 = vsel %vm558, %v557, 0.0
        %v560 = vrot.slane %v559, 4
        %v561 = vadd.f32 %v559, %v560
        %v562 = vrot.slane %v561, 2
        %v563 = vadd.f32 %v561, %v562
        %v564 = vrot.slane %v563, 1
        %v565 = vadd.f32 %v563, %v564
        %v566 = vmul.f32 %v565, 0.25
        %567 = vst [vmem:[%s444] sm:$0x1] %v566
        %v568 = vld [vmem:[%s481] sm:$0x1]
        %v569 = vld [vmem:[%s488] sm:$0x1]
        %v570 = vsub.f32 %v568, %v569
        %v571 = vmul.f32 %v570, %v570
        %572 = vst [vmem:[%s450] sm:$0x1] %v571
        %v573 = vld [vmem:[%s496] sm:$0x7]
        %v574 = vld [vmem:[%s505] sm:$0xff]
        %v575 = vld [vmem:[%s505 + $0x8] sm:$0xff]
        %v576 = vld [vmem:[%s505 + $0x10] sm:$0xff]
        %v577 = vld [vmem:[%s505 + $0x18] sm:$0xff]
        %v578 = vld [vmem:[%s505 + $0x20] sm:$0xff]
        %v579 = vld [vmem:[%s505 + $0x28] sm:$0xff]
        %v580 = vld [vmem:[%s505 + $0x30] sm:$0xff]
        %v581 = vld [vmem:[%s505 + $0x38] sm:$0xff]
        %v582 = vld [vmem:[%s505 + $0x40] sm:$0xff]
        %v583 = vld [vmem:[%s505 + $0x48] sm:$0xff]
        %v584 = vld [vmem:[%s505 + $0x50] sm:$0xff]
        %v585 = vld [vmem:[%s505 + $0x58] sm:$0xff]
        %v586 = vld [vmem:[%s505 + $0x60] sm:$0xff]
        %v587 = vld [vmem:[%s505 + $0x68] sm:$0xff]
        %v588 = vld [vmem:[%s505 + $0x70] sm:$0xff]
        %v589 = vld [vmem:[%s505 + $0x78] sm:$0xff]
        %590 = vxpose.xlu0.b32.start [1/16] %v574, 128
        %591 = vxpose.xlu0.b32.cont [2/16] %v575, 128
        %592 = vxpose.xlu0.b32.cont [3/16] %v576, 128
        %593 = vxpose.xlu0.b32.cont [4/16] %v577, 128
        %594 = vxpose.xlu0.b32.cont [5/16] %v578, 128
        %595 = vxpose.xlu0.b32.cont [6/16] %v579, 128
        %596 = vxpose.xlu0.b32.cont [7/16] %v580, 128
        %597 = vxpose.xlu0.b32.cont [8/16] %v581, 128
        %598 = vxpose.xlu0.b32.cont [9/16] %v582, 128
        %599 = vxpose.xlu0.b32.cont [10/16] %v583, 128
        %600 = vxpose.xlu0.b32.cont [11/16] %v584, 128
        %601 = vxpose.xlu0.b32.cont [12/16] %v585, 128
        %602 = vxpose.xlu0.b32.cont [13/16] %v586, 128
        %603 = vxpose.xlu0.b32.cont [14/16] %v587, 128
        %604 = vxpose.xlu0.b32.cont [15/16] %v588, 128
        %605 = vxpose.xlu0.b32.end [16/16] %v589, 128
        %v606 = vpop.trf.xlu0
        %v607 = vpop.trf.xlu0
        %v608 = vpop.trf.xlu0
        %v609 = vpop.trf.xlu0
        %v610 = vpop.trf.xlu0
        %v611 = vpop.trf.xlu0
        %v612 = vpop.trf.xlu0
        %v613 = vpop.trf.xlu0
        %v614 = vpop.trf.xlu0
        %v615 = vpop.trf.xlu0
        %v616 = vpop.trf.xlu0
        %v617 = vpop.trf.xlu0
        %v618 = vpop.trf.xlu0
        %v619 = vpop.trf.xlu0
        %v620 = vpop.trf.xlu0
        %v621 = vpop.trf.xlu0
        %v622 = vsub.f32 %v573, %v606
        %v623 = vmul.f32 %v622, %v622
        %vm624 = vcmask 1042432
        %v625 = vsel %vm624, %v623, 0.0
        %v626 = vrot.slane %v625, 4
        %v627 = vadd.f32 %v625, %v626
        %v628 = vrot.slane %v627, 2
        %v629 = vadd.f32 %v627, %v628
        %v630 = vrot.slane %v629, 1
        %v631 = vadd.f32 %v629, %v630
        %v632 = vmul.f32 %v631, 0.33333334
        %633 = vst [vmem:[%s456] sm:$0x1] %v632
        %s634 = sand.u32 %s216, 1
        %s635 = scalar_lea.sflag [#allocation3], %s634
        %s636 = sand.u32 %s216, 1
        %s637 = scalar_lea.vmem [#allocation2], %s636
        %s638 = sand.u32 %s26, 1
        %s639 = scalar_lea.sflag [#allocation5], %s638
        %s640 = sand.u32 %s244, 1
        %s641 = scalar_lea.vmem [#allocation4], %s640
        %s642 = sand.u32 %s26, 1
        %s643 = scalar_lea.sflag [#allocation5], %s642
        %s644 = sand.u32 %s272, 1
        %s645 = scalar_lea.vmem [#allocation6], %s644
        // Predicated region
        $region45: #{tpu_custom_call.1} parent=43 // pred_check
          %p646 = pneg %p226
        $region46: #{tpu_custom_call.1} parent=43 // pred_check_branch
          %648 = sbr.rel (%p646) target = $region48
        $region47: #{tpu_custom_call.1} parent=43 // pred_region
          %s650 = ssub.s32 16, 16
          %651 = vsyncadd %s635, %s650
          %s652 = smul.addr %s30, 2
          %s653 = sadd.s32 %s31, %s652
          %s654 = smul.addr %s653, 16
          %s655 = scalar_lea.hbm %s6, %s654
          %s657 = sshll.u32 %s637, 4
          %s658 = int_to_ptr.vmem [resolvable:$true] %s657
          %660 = dma.vmem_to_hbm [thread:$0]  %s658, 16, %s655, %s635
        $region48: #{tpu_custom_call.1} parent=43 // pred_fallthru
          _
        // Predicated region
        $region49: #{tpu_custom_call.1} parent=43 // pred_check
          %p661 = pneg %p254
        $region50: #{tpu_custom_call.1} parent=43 // pred_check_branch
          %663 = sbr.rel (%p661) target = $region52
        $region51: #{tpu_custom_call.1} parent=43 // pred_region
          %s665 = ssub.s32 16, 16
          %666 = vsyncadd %s639, %s665
          %s667 = smul.addr %s30, 2
          %s668 = sadd.s32 %s31, %s667
          %s669 = smul.addr %s668, 16
          %s670 = scalar_lea.hbm %s7, %s669
          %s672 = sshll.u32 %s641, 4
          %s673 = int_to_ptr.vmem [resolvable:$true] %s672
          %675 = dma.vmem_to_hbm [thread:$0]  %s673, 16, %s670, %s639
        $region52: #{tpu_custom_call.1} parent=43 // pred_fallthru
          _
        // Predicated region
        $region53: #{tpu_custom_call.1} parent=43 // pred_check
          %p676 = pneg %p282
        $region54: #{tpu_custom_call.1} parent=43 // pred_check_branch
          %678 = sbr.rel (%p676) target = $region56
        $region55: #{tpu_custom_call.1} parent=43 // pred_region
          %s680 = ssub.s32 16, 16
          %681 = vsyncadd %s643, %s680
          %s682 = smul.addr %s30, 2
          %s683 = sadd.s32 %s31, %s682
          %s684 = smul.addr %s683, 16
          %s685 = scalar_lea.hbm %s8, %s684
          %s687 = sshll.u32 %s645, 4
          %s688 = int_to_ptr.vmem [resolvable:$true] %s687
          %690 = dma.vmem_to_hbm [thread:$0]  %s688, 16, %s685, %s643
        $region56: #{tpu_custom_call.1} parent=43 // pred_fallthru
          _
      $region44: #{tpu_custom_call.1} parent=5 // pred_fallthru
        _
      %p691 = scmp.le.s32.totalorder 2, %s21
      // Predicated region
      $region57: #{tpu_custom_call.1} parent=5 // pred_check
        %p692 = pneg %p691
      $region58: #{tpu_custom_call.1} parent=5 // pred_check_branch
        %694 = sbr.rel (%p692) target = $region60
      $region59: #{tpu_custom_call.1} parent=5 // pred_region
        %s695 = ssub.s32 %s21, 2
        // Predicated region
        $region61: #{tpu_custom_call.1} parent=59 // pred_check
          %p696 = pneg %p232
        $region62: #{tpu_custom_call.1} parent=59 // pred_check_branch
          %698 = sbr.rel (%p696) target = $region64
        $region63: #{tpu_custom_call.1} parent=59 // pred_region
          %s699 = sand.u32 %s217, 1
          %s700 = scalar_lea.sflag [#allocation3], %s699
          %s701 = sand.u32 %s217, 1
          %s702 = scalar_lea.vmem [#allocation2], %s701
          %703 = dma.done %s700, 16
        $region64: #{tpu_custom_call.1} parent=59 // pred_fallthru
          _
        // Predicated region
        $region65: #{tpu_custom_call.1} parent=59 // pred_check
          %p704 = pneg %p260
        $region66: #{tpu_custom_call.1} parent=59 // pred_check_branch
          %706 = sbr.rel (%p704) target = $region68
        $region67: #{tpu_custom_call.1} parent=59 // pred_region
          %s707 = sand.u32 %s27, 1
          %s708 = scalar_lea.sflag [#allocation5], %s707
          %s709 = sand.u32 %s245, 1
          %s710 = scalar_lea.vmem [#allocation4], %s709
          %711 = dma.done %s708, 16
        $region68: #{tpu_custom_call.1} parent=59 // pred_fallthru
          _
        // Predicated region
        $region69: #{tpu_custom_call.1} parent=59 // pred_check
          %p712 = pneg %p288
        $region70: #{tpu_custom_call.1} parent=59 // pred_check_branch
          %714 = sbr.rel (%p712) target = $region72
        $region71: #{tpu_custom_call.1} parent=59 // pred_region
          %s715 = sand.u32 %s27, 1
          %s716 = scalar_lea.sflag [#allocation5], %s715
          %s717 = sand.u32 %s273, 1
          %s718 = scalar_lea.vmem [#allocation6], %s717
          %719 = dma.done %s716, 16
        $region72: #{tpu_custom_call.1} parent=59 // pred_fallthru
          _
      $region60: #{tpu_custom_call.1} parent=5 // pred_fallthru
        _
    $region6: #{tpu_custom_call.1} parent=1 // loop_footer
      %s25 = sadd.s32 1, %s21
    $region7: #{tpu_custom_call.1} parent=1 // loop_footer_branch
      %20 = sbr.rel target = $region3
    $region8: #{tpu_custom_call.1} parent=1 // loop_exit
      _
    %720 = vsyncpa [#allocation3], 1
    %s721 = scalar_lea.sflag [#allocation3], 1
    %722 = vsyncpa %s721, 1
    %723 = vsyncpa [#allocation5], 1
    %s724 = scalar_lea.sflag [#allocation5], 1
    %725 = vsyncpa %s724, 1

</llo_original>
